<compile_context>
chip_gen: v6e
topology: v6e:2x2x1
jax: 0.10.0
libtpu: 0.0.40
codegen_flags: <defaults>
</compile_context>

<pallas_src>
import math

import jax
import jax.numpy as jnp
from jax import lax
from jax.experimental import pallas as pl
from jax.experimental.pallas import tpu as pltpu


def _cdiv(a, b):
    return -(-a // b)


def _vmem_capacity_bytes():
    """Physical VMEM of the local TPU; conservative 64 MiB (v7x-sized) fallback."""
    try:
        cap = getattr(pltpu.get_tpu_info(), "vmem_capacity_bytes", None)
        if cap:
            return int(cap)
    except Exception:
        pass
    return 64 << 20


def _choose_tiling(B, D, itemsize, vmem_cap, max_feature_chunk=None):
    """Pick (TB, Dc, n_b, n_k, vmem_limit): batch tile, feature chunk, grid, limit."""
    if vmem_cap <= (64 << 20):            # v7x-class: 64 MiB physical VMEM, 2 TCs
        work_budget = 20 << 20            # x double-buffer + f32 upcast/product temps
        target_x_bytes = 4 << 20          # HBM bytes of x per grid step
        vmem_limit = 36 << 20
    else:                                  # v5e / v6e: 128 MiB VMEM
        work_budget = 64 << 20
        target_x_bytes = 8 << 20
        vmem_limit = 80 << 20
    vmem_limit = min(vmem_limit, (vmem_cap * 3) // 4)

    # per-element VMEM cost: double-buffered input + an f32 temporary (upcast / x*w)
    elem_cost = 2 * itemsize + 4

    # ---- batch tile: byte-targeted, >=2 tiles when B >= 256 (v7x dual-TC) -----------
    min_b_tiles = min(8, max(1, B // 128))
    tb_target = max(1, target_x_bytes // max(D * itemsize, 1))
    tb = min(B, max(min(B, 128), tb_target), _cdiv(B, min_b_tiles))
    if tb < B:                             # multi-tile: keep output blocks 128-lane dense
        tb = max(128, (tb // 128) * 128)
        if tb >= B:
            tb = B

    # ---- feature chunking for large D (or when forced for testing) ------------------
    dc = D
    force_chunk = max_feature_chunk is not None and D > int(max_feature_chunk)
    if tb * D * elem_cost > work_budget or force_chunk:
        max_rows = work_budget // max(D * elem_cost, 1)
        if not force_chunk and (max_rows >= 128 or max_rows >= B):
            # a smaller batch tile with the full feature extent still fits
            tb = B if max_rows >= B else max(128, (min(tb, max_rows) // 128) * 128)
        else:
            tb = B if B < 128 else min(tb, 128)
            dc = max(128, (work_budget // (tb * elem_cost)) // 128 * 128)
            if force_chunk:
                dc = max(128, (min(dc, int(max_feature_chunk)) // 128) * 128)
            if dc >= D:
                dc = D

    n_b = _cdiv(B, tb)
    n_k = _cdiv(D, dc)
    return tb, dc, n_b, n_k, int(vmem_limit)


def simple_cnn_forward(x, w, b, *, d, max_feature_chunk=None, interpret=False):
    """Forward pass of SimpleCNN.

    x: (B, 1, H, W) or (B, H, W) with H % d == 0, W % d == 0 (single channel)
    w: (d, d) conv kernel, b: scalar bias.  Returns (B,) sigmoid outputs (float32).
    """
    if x.ndim == 3:
        x = x[:, None]
    B, C, H, W = x.shape
    assert C == 1 and H % d == 0 and W % d == 0
    r, s = H // d, W // d
    D = H * W

    x2d = x.reshape(B, D)                 # stream activations in their native dtype
    itemsize = x2d.dtype.itemsize

    TB, Dc, n_b, n_k, vmem_limit = _choose_tiling(
        B, D, itemsize, _vmem_capacity_bytes(), max_feature_chunk)

    # Conv kernel tiled over the full image: W_tiled[h, w'] = w[h % d, w' % d].
    # Only this tiny (1, n_k*Dc) row is ever padded -- x is never copied host-side.
    w_tiled = jnp.tile(w.astype(jnp.float32), (r, s)).reshape(1, D)
    Dp = n_k * Dc
    if Dp != D:
        w_tiled = jnp.pad(w_tiled, ((0, 0), (0, Dp - D)))
    ragged_d = Dp != D

    bias_total = (jnp.asarray(b, jnp.float32) * jnp.float32(r * s)).reshape(1, 1)

    def kernel(x_ref, w_ref, nb_ref, o_ref):
        # x_ref: (TB, Dc) batch/feature tile      w_ref: (1, Dc) tiled weights
        # nb_ref: (1, 1) SMEM scalar (num_patches*bias)   o_ref: (1, TB) lane-dense out
        k = pl.program_id(1)
        xv = x_ref[...].astype(jnp.float32)
        if ragged_d:
            # Last feature chunk reads past D: zero the garbage lanes (the padded
            # weights there are zero too, but garbage could be NaN/inf).
            col = k * Dc + lax.broadcasted_iota(jnp.int32, xv.shape, 1)
            xv = jnp.where(col < D, xv, 0.0)
        part = jnp.sum(xv * w_ref[...], axis=-1)[None, :]       # VPU mul + lane reduce
        if n_k == 1:
            o_ref[...] = jax.nn.sigmoid(part + nb_ref[0, 0])
        else:
            @pl.when(k == 0)
            def _init():
                o_ref[...] = jnp.zeros_like(o_ref)

            o_ref[...] += part

            @pl.when(k == n_k - 1)
            def _finalize():
                o_ref[...] = jax.nn.sigmoid(o_ref[...] + nb_ref[0, 0])

    out = pl.pallas_call(
        kernel,
        out_shape=jax.ShapeDtypeStruct((1, n_b * TB), jnp.float32),
        grid=(n_b, n_k),
        in_specs=[
            pl.BlockSpec((TB, Dc), lambda i, k: (i, k)),          # x: pipelined tiles
            pl.BlockSpec((1, Dc), lambda i, k: (0, k)),           # tiled weights
            pl.BlockSpec(memory_space=pltpu.MemorySpace.SMEM),    # scalar bias total
        ],
        out_specs=pl.BlockSpec((1, TB), lambda i, k: (0, i)),     # lane-dense output
        compiler_params=pltpu.CompilerParams(
            dimension_semantics=("parallel", "arbitrary"),
            vmem_limit_bytes=vmem_limit,
        ),
        cost_estimate=pl.CostEstimate(
            flops=2 * B * D,
            transcendentals=B,
            bytes_accessed=B * D * itemsize + Dp * 4 + n_b * TB * 4,
        ),
        interpret=interpret,
    )(x2d, w_tiled, bias_total)

    # Slots >= B of the last (possibly ragged) batch tile hold garbage: slice them off.
    return out[0, :B]


def _reference(x, w, b, d):
    conv = lax.conv_general_dilated(
        x, w.reshape(1, 1, d, d), window_strides=(d, d), padding="VALID",
        dimension_numbers=("NCHW", "OIHW", "NCHW")) + b
    return jax.nn.sigmoid(conv.reshape(x.shape[0], -1).sum(axis=1))


def _run_case(key, *, B, H, W, d, b_val, **kw):
    kx, kw_ = jax.random.split(key)
    x = 0.15 * jax.random.normal(kx, (B, 1, H, W), jnp.float32)
    # kaiming_normal_ on a (1,1,d,d) conv weight: fan_in = d*d, gain = sqrt(2); zero bias
    w = jax.random.normal(kw_, (d, d), jnp.float32) * math.sqrt(2.0 / (d * d))
    b = jnp.float32(b_val)
    out = simple_cnn_forward(x, w, b, d=d, **kw)
    jax.block_until_ready(out)
    ref = _reference(x, w, b, d)
    assert out.shape == (B,)
    assert jnp.allclose(out, ref, atol=1e-5, rtol=1e-5), (out, ref)
    return out


if __name__ == "__main__":
    k1, k2, k3 = jax.random.split(jax.random.PRNGKey(0), 3)

    # 1) module-consistent small shape: d=4 patches on a 16x16 single-channel image.
    _run_case(k1, B=8, H=16, W=16, d=4, b_val=0.0)

    # 2) feature-dim chunking path (forced small chunk): exercises the "arbitrary"
    #    reduction axis, accumulator init/finalize and ragged lane-tail masking, plus a
    #    non-multiple-of-8 batch handled as a single full-extent tile.
    _run_case(k2, B=10, H=32, W=32, d=4, b_val=0.25, max_feature_chunk=384)

    # 3) multiple batch tiles with a ragged last tile and no host-side padding.
    _run_case(k3, B=260, H=16, W=16, d=4, b_val=-0.1)

    print("KERNEL_OK")
</pallas_src>

<mosaic_0001>
module attributes {stable_mosaic.version = 11 : i64} {
  func.func @kernel(%arg0: i32, %arg1: i32, %arg2: memref<8x256xf32, #tpu.memory_space<vmem>>, %arg3: memref<1x256xf32, #tpu.memory_space<vmem>>, %arg4: memref<1x1xf32, #tpu.memory_space<smem>>, %arg5: memref<1x8xf32, #tpu.memory_space<vmem>>) attributes {dimension_semantics = [#tpu.dimension_semantics<parallel>, #tpu.dimension_semantics<arbitrary>], iteration_bounds = array<i64: 1, 1>, scalar_prefetch = 0 : i64, scratch_operands = 0 : i64, tpu.core_type = #tpu.core_type<tc>, window_params = [{transform_indices = @transform_0, window_bounds = array<i64: 8, 256>}, {transform_indices = @transform_1, window_bounds = array<i64: 1, 256>}, {transform_indices = @transform_2, window_bounds = array<i64: 1, 1>}, {transform_indices = @transform_3, window_bounds = array<i64: 1, 8>}]} {
    %c0 = arith.constant 0 : index
    %c0_0 = arith.constant 0 : index
    %0 = vector.load %arg2[%c0, %c0_0] : memref<8x256xf32, #tpu.memory_space<vmem>>, vector<8x256xf32>
    %c0_1 = arith.constant 0 : index
    %c0_2 = arith.constant 0 : index
    %1 = vector.load %arg3[%c0_1, %c0_2] : memref<1x256xf32, #tpu.memory_space<vmem>>, vector<1x256xf32>
    %2 = vector.broadcast %1 : vector<1x256xf32> to vector<8x256xf32>
    %3 = arith.mulf %0, %2 : vector<8x256xf32>
    %cst = arith.constant dense<0.000000e+00> : vector<8xf32>
    %4 = vector.multi_reduction <add>, %3, %cst [1] : vector<8x256xf32> to vector<8xf32>
    %5 = vector.shape_cast %4 : vector<8xf32> to vector<1x8xf32>
    %c0_3 = arith.constant 0 : index
    %c0_4 = arith.constant 0 : index
    %6 = memref.load %arg4[%c0_3, %c0_4] : memref<1x1xf32, #tpu.memory_space<smem>>
    %7 = vector.broadcast %6 : f32 to vector<1x8xf32>
    %8 = arith.addf %5, %7 : vector<1x8xf32>
    %9 = arith.negf %8 : vector<1x8xf32>
    %10 = math.exp %9 : vector<1x8xf32>
    %cst_5 = arith.constant 1.000000e+00 : f32
    %11 = vector.broadcast %cst_5 : f32 to vector<1x8xf32>
    %12 = arith.addf %11, %10 : vector<1x8xf32>
    %13 = arith.divf %11, %12 : vector<1x8xf32>
    %c0_6 = arith.constant 0 : index
    %c0_7 = arith.constant 0 : index
    %14 = vector.load %arg5[%c0_6, %c0_7] : memref<1x8xf32, #tpu.memory_space<vmem>>, vector<1x8xf32>
    tpu.vector_store %arg5[%c0_6, %c0_7], %13 {strides = array<i32>} : memref<1x8xf32, #tpu.memory_space<vmem>>, vector<1x8xf32>,
    return
  }
  func.func @transform_0(%arg0: i32, %arg1: i32) -> (i32, i32) {
    %c0_i32 = arith.constant 0 : i32
    return %arg0, %arg1 : i32, i32
  }
  func.func @transform_1(%arg0: i32, %arg1: i32) -> (i32, i32) {
    %c0_i32 = arith.constant 0 : i32
    %c0_i32_0 = arith.constant 0 : i32
    return %c0_i32, %arg1 : i32, i32
  }
  func.func @transform_2(%arg0: i32, %arg1: i32) -> (i32, i32) {
    %c0_i32 = arith.constant 0 : i32
    %c0_i32_0 = arith.constant 0 : i32
    %c0_i32_1 = arith.constant 0 : i32
    return %c0_i32, %c0_i32_0 : i32, i32
  }
  func.func @transform_3(%arg0: i32, %arg1: i32) -> (i32, i32) {
    %c0_i32 = arith.constant 0 : i32
    %c0_i32_0 = arith.constant 0 : i32
    return %c0_i32, %arg0 : i32, i32
  }
}

</mosaic_0001>

<llo_original>
// kernel: tpu_custom_call.1
$region0: #{tpu_custom_call.1}
  #allocation0 [shape = 'u32[]', space=smem, size = 0x4, offset = 0x4, fixed_abs, tag = 'smem constant byte address 0x4 - core index']
  #allocation1 [shape = 'u32[144,128]{1,0:T(1,128)}', space=vmem, size = 0x12000, scoped, tag = 'internal scratch']
  #allocation2 [shape = 'f32[1,1]{1,0:T(1,128)S(6)}', space=smem, size = 0x200, scoped, tag = 'scoped memory for tpu_custom_call.1']
  %s0 = inlined_call_operand.hbm [shape: f32[8,256], index: 0, kind: input, shape index: {}]
  %s1 = inlined_call_operand.vmem [shape: f32[1,256], index: 1, kind: input, shape index: {}]
  %s2 = inlined_call_operand.<no memory space> [shape: f32[1,1], index: 2, kind: input, shape index: {}]
  %s3 = inlined_call_operand.hbm [shape: f32[1,8], index: 3, kind: output, shape index: {}]
  %s4 = sld [smem:[#allocation0]]
  $region26: #{tpu_custom_call.1} parent=0
    _
  %s6 = ssub.s32 1, %s4
  %s7 = scalar_select 0, %s6, %s4
  %8 = sst [smem:[#allocation2]] %s2
  $region1: #{tpu_custom_call.1} parent=0
    #allocation3 [shape = 'u8[8192]{0}', space=vmem, size = 0x2000, scoped, tag = 'input window, operand 0, single buffered']
    #allocation4 [shape = 's32[1]{0}', space=sflag, size = 0x4, scoped, tag = 'scoped memory for tpu_custom_call.1']
    #allocation5 [shape = 's32[1]{0}', space=sflag, size = 0x4, scoped, tag = 'scoped memory for tpu_custom_call.1']
    #allocation6 [shape = 'u8[512]{0}', space=vmem, size = 0x400, scoped, tag = 'output window, operand 0, single buffered']
    %9 = vsyncpa [#allocation4], 0
    %10 = vsyncpa [#allocation5], 0
    // Predicated region
    $region2: #{tpu_custom_call.1} parent=1 // pred_check
      _
    $region3: #{tpu_custom_call.1} parent=1 // pred_check_branch
      %12 = sbr.rel (0) target = $region5
    $region4: #{tpu_custom_call.1} parent=1 // pred_region
      %s14 = ssub.s32 256, 256
      %15 = vsyncadd [#allocation4], %s14
      %s17 = sshll.u32 [#allocation3], 4
      %s18 = int_to_ptr.vmem [resolvable:$true] %s17
      %20 = dma.hbm_to_vmem [thread:$0]  %s0, 256, %s18, [#allocation4]
    $region5: #{tpu_custom_call.1} parent=1 // pred_fallthru
      _
    // Predicated region
    $region6: #{tpu_custom_call.1} parent=1 // pred_check
      _
    $region7: #{tpu_custom_call.1} parent=1 // pred_check_branch
      %22 = sbr.rel (0) target = $region9
    $region8: #{tpu_custom_call.1} parent=1 // pred_region
      _
    $region9: #{tpu_custom_call.1} parent=1 // pred_fallthru
      _
    // Predicated region
    $region10: #{tpu_custom_call.1} parent=1 // pred_check
      _
    $region11: #{tpu_custom_call.1} parent=1 // pred_check_branch
      %24 = sbr.rel (0) target = $region13
    $region12: #{tpu_custom_call.1} parent=1 // pred_region
      _
    $region13: #{tpu_custom_call.1} parent=1 // pred_fallthru
      _
    // Predicated region
    $region14: #{tpu_custom_call.1} parent=1 // pred_check
      _
    $region15: #{tpu_custom_call.1} parent=1 // pred_check_branch
      %26 = sbr.rel (0) target = $region17
    $region16: #{tpu_custom_call.1} parent=1 // pred_region
      %27 = dma.done [#allocation4], 256
    $region17: #{tpu_custom_call.1} parent=1 // pred_fallthru
      _
    %v28 = vld [vmem:[#allocation3] sm:$0xff]
    %v29 = vld [vmem:[#allocation3 + $0x8] sm:$0xff]
    %v30 = vld [vmem:[%s1] sm:$0x3]
    %v32 = vlaneseq
    %v33 = vshrl.u32 %v32, 7
    %v34 = vsub.s32 0, %v33
    %v35 = vrot.slane %v30, %v34
    %v36 = vlaneseq
    %v37 = vshrl.u32 %v36, 7
    %v38 = vsub.s32 1, %v37
    %v39 = vrot.slane %v30, %v38
    %v42 = vmul.f32 %v28, %v35
    %v43 = vmul.f32 %v29, %v39
    %v44 = vadd.f32 %v42, %v43
    %45 = vadd.xlane.f32.xlu0 %v44
    %v46 = vpop.xlane.xlu0 %45
    %s47 = sld [smem:[#allocation2]]
    %v48 = vstv %s47
    %v49 = vadd.f32 %v46, %v48
    %v50 = vxor.u32 %v49, 2147483648
    %v51 = vmul.f32 %v50, 1.442695
    %v52 = vpow.pop %v51
    %v53 = vadd.f32 %v52, 1.0
    %v54 = vrcp.pop %v53
    %v55 = vmul.f32 1.0, %v54
    %v57 = vlaneseq
    %v58 = vand.u32 %v57, 127
    %v59 = vlaneseq
    %v60 = vshrl.u32 %v59, 7
    %v61 = vsub.s32 %v58, %v60
    %v62 = vrot.slane %v55, %v61
    %vm64 = vcmask 57344
    %65 = vst.msk [vmem:[#allocation6] sm:$0x1] %vm64, %v62
    // Predicated region
    $region18: #{tpu_custom_call.1} parent=1 // pred_check
      _
    $region19: #{tpu_custom_call.1} parent=1 // pred_check_branch
      %67 = sbr.rel (0) target = $region21
    $region20: #{tpu_custom_call.1} parent=1 // pred_region
      %s69 = ssub.s32 16, 16
      %70 = vsyncadd [#allocation5], %s69
      %s72 = sshll.u32 [#allocation6], 4
      %s73 = int_to_ptr.vmem [resolvable:$true] %s72
      %75 = dma.vmem_to_hbm [thread:$0]  %s73, 16, %s3, [#allocation5]
    $region21: #{tpu_custom_call.1} parent=1 // pred_fallthru
      _
    // Predicated region
    $region22: #{tpu_custom_call.1} parent=1 // pred_check
      _
    $region23: #{tpu_custom_call.1} parent=1 // pred_check_branch
      %77 = sbr.rel (0) target = $region25
    $region24: #{tpu_custom_call.1} parent=1 // pred_region
      %78 = dma.done [#allocation5], 16
    $region25: #{tpu_custom_call.1} parent=1 // pred_fallthru
      _
    %79 = vsyncpa [#allocation4], 1
    %80 = vsyncpa [#allocation5], 1

</llo_original>
